<compile_context>
chip_gen: v7x
topology: tpu7x:2x2x1
jax: 0.10.0
libtpu: 0.0.40
codegen_flags: <defaults>
</compile_context>

<pallas_src>
import functools

import numpy as np

import jax
import jax.numpy as jnp
from jax.experimental import pallas as pl
from jax.experimental.pallas import tpu as pltpu


def _round_up(a: int, b: int) -> int:
    return (a + b - 1) // b * b


def _vpu_kernel(ir_ref, xh_ref, xc_ref, o_ref, win_ref, *, T_ir, HW, TT):
    # ir_ref:  SMEM [T_ir] impulse-response taps (f32 scalars)
    # xh_ref:  VMEM [TR, HW] halo = last HW input samples before this output tile
    # xc_ref:  VMEM [TR, TT] current input time tile
    # o_ref:   VMEM [TR, TT] output tile (lane-dense, written exactly once)
    # win_ref: VMEM [TR, HW+TT] f32 scratch window [halo | cur]
    x_cur = xc_ref[...].astype(jnp.float32)
    acc = ir_ref[0] * x_cur                              # tap 0 initializes the accumulator
    if T_ir > 1:
        # The first time tile has no real halo (it would index before t=0): zero it.
        first_mask = (pl.program_id(1) > 0).astype(jnp.float32)
        win_ref[:, :HW] = xh_ref[...].astype(jnp.float32) * first_mask
        win_ref[:, HW:] = x_cur
        # Shifted reads come from the VMEM-staged window (no concatenated temp per tap).
        for k in range(1, T_ir):
            acc = acc + ir_ref[k] * win_ref[:, HW - k:HW - k + TT]
    o_ref[...] = acc


def _mxu_kernel(w_ref, xh_ref, xc_ref, o_ref, *, HW):
    # Banded-Toeplitz formulation: y_tile = [halo | cur] @ W, W[p, u] = ir[HW + u - p].
    # Split into two MXU matmuls so the [halo|cur] concat is never materialized.
    first_mask = (pl.program_id(1) > 0).astype(jnp.float32)   # zero halo term on tile 0
    acc = first_mask * jnp.dot(xh_ref[...], w_ref[:HW, :],
                               preferred_element_type=jnp.float32)
    acc = acc + jnp.dot(xc_ref[...], w_ref[HW:, :],
                        preferred_element_type=jnp.float32)
    o_ref[...] = acc


def ir_reverb(x, ir, *, hbm_dtype=jnp.float32, mxu_threshold=32):
    """x: [B, C, T], ir: [T_ir] -> full linear convolution [B, C, T + T_ir - 1] (f32)."""
    B, C, T = x.shape
    ir = jnp.asarray(ir).reshape(-1).astype(jnp.float32)
    T_ir = int(ir.shape[0])
    L = T + T_ir - 1
    R = B * C

    # ---- tile selection ---------------------------------------------------------------
    if L >= 16384:
        TT = 2048
    elif L >= 4096:
        TT = 1024
    elif L >= 1024:
        TT = 512
    elif L >= 512:
        TT = 256
    else:
        TT = 128
    HW = _round_up(max(T_ir - 1, 1), 128)      # lane-aligned halo width
    if HW > TT:                                # halo must be block-alignable: HW | TT
        TT = HW
    elif TT % HW:
        TT = _round_up(TT, HW)
    L_pad = _round_up(L, TT)
    n_tt = L_pad // TT
    m = TT // HW                               # halo blocks per time tile

    TR = min(128, _round_up(R, 8))
    if n_tt < 2 and R > 8:
        # v7x megacore: make sure at least one parallel axis has >= 2 blocks.
        TR = min(TR, max(8, _round_up((R + 1) // 2, 8)))
    R_pad = _round_up(R, TR)

    use_mxu = T_ir > mxu_threshold
    itemsize = jnp.dtype(hbm_dtype).itemsize

    # ---- HBM input slab: single pad, no left zero tile, optional bf16 ------------------
    x2 = jnp.pad(x.reshape(R, T).astype(hbm_dtype), ((0, R_pad - R), (0, L_pad - T)))

    # ---- specs --------------------------------------------------------------------------
    halo_spec = pl.BlockSpec((TR, HW), lambda i, j: (i, jnp.maximum(j * m - 1, 0)))
    cur_spec = pl.BlockSpec((TR, TT), lambda i, j: (i, j))
    out_spec = pl.BlockSpec((TR, TT), lambda i, j: (i, j))

    if use_mxu:
        # Banded shifted-diagonal weight slab W[p, u] = ir[HW + u - p] (else 0).
        p = jnp.arange(HW + TT)[:, None]
        u = jnp.arange(TT)[None, :]
        k = HW + u - p
        w_full = jnp.where((k >= 0) & (k < T_ir),
                           jnp.take(ir, jnp.clip(k, 0, T_ir - 1), axis=0),
                           0.0).astype(hbm_dtype)
        kernel = functools.partial(_mxu_kernel, HW=HW)
        in_specs = [pl.BlockSpec((HW + TT, TT), lambda i, j: (0, 0)),  # resident in VMEM
                    halo_spec, cur_spec]
        first_arg = w_full
        scratch_shapes = []
        w_bytes = (HW + TT) * TT * itemsize
        scratch_bytes = 0
    else:
        kernel = functools.partial(_vpu_kernel, T_ir=T_ir, HW=HW, TT=TT)
        in_specs = [pl.BlockSpec(memory_space=pltpu.MemorySpace.SMEM),  # ir taps as scalars
                    halo_spec, cur_spec]
        first_arg = ir
        scratch_shapes = [pltpu.VMEM((TR, HW + TT), jnp.float32)]
        w_bytes = 0
        scratch_bytes = TR * (HW + TT) * 4

    # ---- VMEM budget (re-derived for v7x's 64 MiB) --------------------------------------
    vmem_est = (2 * TR * TT * itemsize        # current-tile double buffer
                + 2 * TR * HW * itemsize      # halo double buffer
                + 2 * TR * TT * 4             # output double buffer
                + 2 * w_bytes                 # resident weight slab (MXU path)
                + scratch_bytes)
    if vmem_est > 48 * 2**20:
        # TODO(synk): for very long IRs, stream W over a third 'arbitrary' tap-block grid
        # axis (K_blk 128/256) accumulating into a VMEM f32 scratch with pl.when init/finalize.
        raise NotImplementedError("IR too long for the single-pass resident-W MXU path")
    vmem_limit = int(min(max(32 * 2**20, 2 * vmem_est), 64 * 2**20))

    cost = pl.CostEstimate(
        flops=int(2 * R_pad * L_pad * T_ir),
        transcendentals=0,
        bytes_accessed=int(R_pad * L_pad * itemsize            # current-tile reads
                           + R_pad * n_tt * HW * itemsize      # halo reads
                           + R_pad * L_pad * 4                 # output writes
                           + (w_bytes if use_mxu else 4 * T_ir)),
    )

    out = pl.pallas_call(
        kernel,
        out_shape=jax.ShapeDtypeStruct((R_pad, L_pad), jnp.float32),
        grid=(R_pad // TR, n_tt),
        in_specs=in_specs,
        out_specs=out_spec,
        scratch_shapes=scratch_shapes,
        compiler_params=pltpu.CompilerParams(
            dimension_semantics=("parallel", "parallel"),
            vmem_limit_bytes=vmem_limit,
        ),
        cost_estimate=cost,
    )(first_arg, x2, x2)

    return out[:R, :L].reshape(B, C, L)


def _ref_conv(x, ir):
    # Exact float64 reference on host (avoids TPU default matmul/conv precision).
    xn = np.asarray(x, dtype=np.float64)
    irn = np.asarray(ir, dtype=np.float64)
    B, C, _ = xn.shape
    return np.stack(
        [np.stack([np.convolve(xn[b, c], irn, mode="full") for c in range(C)], 0)
         for b in range(B)], 0)


if __name__ == "__main__":
    key = jax.random.PRNGKey(0)
    kx, kir, kx2, kir2 = jax.random.split(key, 4)

    # --- test 1: short IR -> unrolled VPU tap path, f32 HBM slab (exact semantics) -------
    B, C, T, T_ir = 2, 4, 16, 8
    x = jax.random.normal(kx, (B, C, T), dtype=jnp.float32)
    ir = jax.random.normal(kir, (T_ir,), dtype=jnp.float32) * jnp.exp(
        -0.5 * jnp.arange(T_ir, dtype=jnp.float32))
    y = jax.block_until_ready(ir_reverb(x, ir))
    assert y.shape == (B, C, T + T_ir - 1), y.shape
    ref = _ref_conv(x, ir)
    err = float(np.max(np.abs(np.asarray(y) - ref)))
    assert np.allclose(np.asarray(y), ref, atol=1e-4, rtol=1e-4), err

    # --- test 2: long IR -> banded-Toeplitz MXU path, f32 slab ---------------------------
    B2, C2, T2, T_ir2 = 2, 4, 200, 160
    x2 = jax.random.normal(kx2, (B2, C2, T2), dtype=jnp.float32)
    ir2 = jax.random.normal(kir2, (T_ir2,), dtype=jnp.float32) * jnp.exp(
        -0.2 * jnp.arange(T_ir2, dtype=jnp.float32))
    y2 = jax.block_until_ready(ir_reverb(x2, ir2))
    assert y2.shape == (B2, C2, T2 + T_ir2 - 1), y2.shape
    ref2 = _ref_conv(x2, ir2)
    err2 = float(np.max(np.abs(np.asarray(y2) - ref2)))
    # Loose tolerance covers possible reduced-precision MXU passes for f32 operands.
    assert np.allclose(np.asarray(y2), ref2, atol=5e-2, rtol=5e-2), err2

    # --- test 3: same long IR, bf16 HBM slab (halves input traffic), f32 accumulation ----
    y3 = jax.block_until_ready(ir_reverb(x2, ir2, hbm_dtype=jnp.bfloat16))
    xq = np.asarray(x2.astype(jnp.bfloat16).astype(jnp.float32))
    irq = np.asarray(ir2.astype(jnp.bfloat16).astype(jnp.float32))
    ref3 = _ref_conv(xq, irq)
    err3 = float(np.max(np.abs(np.asarray(y3) - ref3)))
    assert np.allclose(np.asarray(y3), ref3, atol=5e-3, rtol=5e-3), err3

    print("KERNEL_OK")
</pallas_src>

<mosaic_0001>
module attributes {stable_mosaic.version = 11 : i64} {
  func.func @_vpu_kernel(%arg0: i32, %arg1: i32, %arg2: memref<8xf32, #tpu.memory_space<smem>>, %arg3: memref<8x128xf32, #tpu.memory_space<vmem>>, %arg4: memref<8x128xf32, #tpu.memory_space<vmem>>, %arg5: memref<8x128xf32, #tpu.memory_space<vmem>>, %arg6: memref<8x256xf32, #tpu.memory_space<vmem>>) attributes {dimension_semantics = [#tpu.dimension_semantics<parallel>, #tpu.dimension_semantics<parallel>], iteration_bounds = array<i64: 1, 1>, scalar_prefetch = 0 : i64, scratch_operands = 1 : i64, tpu.core_type = #tpu.core_type<tc>, window_params = [{transform_indices = @transform_0, window_bounds = array<i64: 8>}, {transform_indices = @transform_1, window_bounds = array<i64: 8, 128>}, {transform_indices = @transform_2, window_bounds = array<i64: 8, 128>}, {transform_indices = @transform_3, window_bounds = array<i64: 8, 128>}]} {
    %c0 = arith.constant 0 : index
    %c0_0 = arith.constant 0 : index
    %0 = vector.load %arg4[%c0, %c0_0] : memref<8x128xf32, #tpu.memory_space<vmem>>, vector<8x128xf32>
    %c0_1 = arith.constant 0 : index
    %1 = memref.load %arg2[%c0_1] : memref<8xf32, #tpu.memory_space<smem>>
    %2 = vector.broadcast %1 : f32 to vector<8x128xf32>
    %3 = arith.mulf %2, %0 : vector<8x128xf32>
    %c0_i32 = arith.constant 0 : i32
    %4 = arith.cmpi sgt, %arg1, %c0_i32 : i32
    %5 = arith.extui %4 : i1 to i32
    %6 = arith.sitofp %5 : i32 to f32
    %c0_2 = arith.constant 0 : index
    %c0_3 = arith.constant 0 : index
    %7 = vector.load %arg3[%c0_2, %c0_3] : memref<8x128xf32, #tpu.memory_space<vmem>>, vector<8x128xf32>
    %8 = vector.broadcast %6 : f32 to vector<8x128xf32>
    %9 = arith.mulf %7, %8 : vector<8x128xf32>
    %c0_4 = arith.constant 0 : index
    %c0_5 = arith.constant 0 : index
    %10 = vector.load %arg6[%c0_4, %c0_5] : memref<8x256xf32, #tpu.memory_space<vmem>>, vector<8x128xf32>
    tpu.vector_store %arg6[%c0_4, %c0_5], %9 {strides = array<i32>} : memref<8x256xf32, #tpu.memory_space<vmem>>, vector<8x128xf32>,
    %c0_6 = arith.constant 0 : index
    %c128 = arith.constant 128 : index
    %11 = vector.load %arg6[%c0_6, %c128] : memref<8x256xf32, #tpu.memory_space<vmem>>, vector<8x128xf32>
    tpu.vector_store %arg6[%c0_6, %c128], %0 {strides = array<i32>} : memref<8x256xf32, #tpu.memory_space<vmem>>, vector<8x128xf32>,
    %c1 = arith.constant 1 : index
    %12 = memref.load %arg2[%c1] : memref<8xf32, #tpu.memory_space<smem>>
    %c0_7 = arith.constant 0 : index
    %c127 = arith.constant 127 : index
    %13 = vector.load %arg6[%c0_7, %c127] : memref<8x256xf32, #tpu.memory_space<vmem>>, vector<8x128xf32>
    %14 = vector.broadcast %12 : f32 to vector<8x128xf32>
    %15 = arith.mulf %14, %13 : vector<8x128xf32>
    %16 = arith.addf %3, %15 : vector<8x128xf32>
    %c2 = arith.constant 2 : index
    %17 = memref.load %arg2[%c2] : memref<8xf32, #tpu.memory_space<smem>>
    %c0_8 = arith.constant 0 : index
    %c126 = arith.constant 126 : index
    %18 = vector.load %arg6[%c0_8, %c126] : memref<8x256xf32, #tpu.memory_space<vmem>>, vector<8x128xf32>
    %19 = vector.broadcast %17 : f32 to vector<8x128xf32>
    %20 = arith.mulf %19, %18 : vector<8x128xf32>
    %21 = arith.addf %16, %20 : vector<8x128xf32>
    %c3 = arith.constant 3 : index
    %22 = memref.load %arg2[%c3] : memref<8xf32, #tpu.memory_space<smem>>
    %c0_9 = arith.constant 0 : index
    %c125 = arith.constant 125 : index
    %23 = vector.load %arg6[%c0_9, %c125] : memref<8x256xf32, #tpu.memory_space<vmem>>, vector<8x128xf32>
    %24 = vector.broadcast %22 : f32 to vector<8x128xf32>
    %25 = arith.mulf %24, %23 : vector<8x128xf32>
    %26 = arith.addf %21, %25 : vector<8x128xf32>
    %c4 = arith.constant 4 : index
    %27 = memref.load %arg2[%c4] : memref<8xf32, #tpu.memory_space<smem>>
    %c0_10 = arith.constant 0 : index
    %c124 = arith.constant 124 : index
    %28 = vector.load %arg6[%c0_10, %c124] : memref<8x256xf32, #tpu.memory_space<vmem>>, vector<8x128xf32>
    %29 = vector.broadcast %27 : f32 to vector<8x128xf32>
    %30 = arith.mulf %29, %28 : vector<8x128xf32>
    %31 = arith.addf %26, %30 : vector<8x128xf32>
    %c5 = arith.constant 5 : index
    %32 = memref.load %arg2[%c5] : memref<8xf32, #tpu.memory_space<smem>>
    %c0_11 = arith.constant 0 : index
    %c123 = arith.constant 123 : index
    %33 = vector.load %arg6[%c0_11, %c123] : memref<8x256xf32, #tpu.memory_space<vmem>>, vector<8x128xf32>
    %34 = vector.broadcast %32 : f32 to vector<8x128xf32>
    %35 = arith.mulf %34, %33 : vector<8x128xf32>
    %36 = arith.addf %31, %35 : vector<8x128xf32>
    %c6 = arith.constant 6 : index
    %37 = memref.load %arg2[%c6] : memref<8xf32, #tpu.memory_space<smem>>
    %c0_12 = arith.constant 0 : index
    %c122 = arith.constant 122 : index
    %38 = vector.load %arg6[%c0_12, %c122] : memref<8x256xf32, #tpu.memory_space<vmem>>, vector<8x128xf32>
    %39 = vector.broadcast %37 : f32 to vector<8x128xf32>
    %40 = arith.mulf %39, %38 : vector<8x128xf32>
    %41 = arith.addf %36, %40 : vector<8x128xf32>
    %c7 = arith.constant 7 : index
    %42 = memref.load %arg2[%c7] : memref<8xf32, #tpu.memory_space<smem>>
    %c0_13 = arith.constant 0 : index
    %c121 = arith.constant 121 : index
    %43 = vector.load %arg6[%c0_13, %c121] : memref<8x256xf32, #tpu.memory_space<vmem>>, vector<8x128xf32>
    %44 = vector.broadcast %42 : f32 to vector<8x128xf32>
    %45 = arith.mulf %44, %43 : vector<8x128xf32>
    %46 = arith.addf %41, %45 : vector<8x128xf32>
    %c0_14 = arith.constant 0 : index
    %c0_15 = arith.constant 0 : index
    %47 = vector.load %arg5[%c0_14, %c0_15] : memref<8x128xf32, #tpu.memory_space<vmem>>, vector<8x128xf32>
    tpu.vector_store %arg5[%c0_14, %c0_15], %46 {strides = array<i32>} : memref<8x128xf32, #tpu.memory_space<vmem>>, vector<8x128xf32>,
    return
  }
  func.func @transform_0(%arg0: i32, %arg1: i32) -> i32 {
    %c0_i32 = arith.constant 0 : i32
    %c0_i32_0 = arith.constant 0 : i32
    return %c0_i32 : i32
  }
  func.func @transform_1(%arg0: i32, %arg1: i32) -> (i32, i32) {
    %c1_i32 = arith.constant 1 : i32
    %0 = arith.muli %arg1, %c1_i32 : i32
    %c1_i32_0 = arith.constant 1 : i32
    %1 = arith.subi %0, %c1_i32_0 : i32
    %c0_i32 = arith.constant 0 : i32
    %2 = arith.maxsi %1, %c0_i32 : i32
    %c0_i32_1 = arith.constant 0 : i32
    return %arg0, %2 : i32, i32
  }
  func.func @transform_2(%arg0: i32, %arg1: i32) -> (i32, i32) {
    %c0_i32 = arith.constant 0 : i32
    return %arg0, %arg1 : i32, i32
  }
  func.func @transform_3(%arg0: i32, %arg1: i32) -> (i32, i32) {
    %c0_i32 = arith.constant 0 : i32
    return %arg0, %arg1 : i32, i32
  }
}

</mosaic_0001>

<llo_original>
// kernel: tpu_custom_call.1
$region0: #{tpu_custom_call.1}
  #allocation0 [shape = 'u32[]', space=smem, size = 0x4, offset = 0x4, fixed_abs, tag = 'smem constant byte address 0x4 - core index']
  #allocation1 [shape = 'u32[144,128]{1,0:T(1,128)}', space=vmem, size = 0x12000, scoped, tag = 'internal scratch']
  #allocation2 [shape = 'f32[8,256]{1,0:T(8,128)}', space=vmem, size = 0x2000, scoped, tag = 'scratch operand']
  %s0 = inlined_call_operand.hbm [shape: f32[8], index: 0, kind: input, shape index: {}]
  %s1 = inlined_call_operand.hbm [shape: f32[8,128], index: 1, kind: input, shape index: {}]
  %s2 = inlined_call_operand.hbm [shape: f32[8,128], index: 2, kind: input, shape index: {}]
  %s3 = inlined_call_operand.hbm [shape: f32[8,128], index: 3, kind: output, shape index: {}]
  %s4 = sld [smem:[#allocation0]]
  $region34: #{tpu_custom_call.1} parent=0
    _
  %s6 = ssub.s32 1, %s4
  %s7 = scalar_select 0, %s6, %s4
  $region1: #{tpu_custom_call.1} parent=0
    #allocation3 [shape = 'u8[512]{0}', space=smem, size = 0x200, scoped, tag = 'input window, operand 0, single buffered']
    #allocation4 [shape = 's32[1]{0}', space=sflag, size = 0x4, scoped, tag = 'scoped memory for tpu_custom_call.1']
    #allocation5 [shape = 's32[1]{0}', space=sflag, size = 0x4, scoped, tag = 'scoped memory for tpu_custom_call.1']
    #allocation6 [shape = 's32[1]{0}', space=sflag, size = 0x4, scoped, tag = 'scoped memory for tpu_custom_call.1']
    #allocation7 [shape = 'u8[4096]{0}', space=vmem, size = 0x1000, scoped, tag = 'input window, operand 1, single buffered']
    #allocation8 [shape = 'u8[4096]{0}', space=vmem, size = 0x1000, scoped, tag = 'input window, operand 2, single buffered']
    #allocation9 [shape = 's32[1]{0}', space=sflag, size = 0x4, scoped, tag = 'scoped memory for tpu_custom_call.1']
    #allocation10 [shape = 'u8[4096]{0}', space=vmem, size = 0x1000, scoped, tag = 'output window, operand 0, single buffered']
    %8 = vsyncpa [#allocation6], 0
    %9 = vsyncpa [#allocation4], 0
    %10 = vsyncpa [#allocation9], 0
    %11 = vsyncpa [#allocation5], 0
    // Predicated region
    $region2: #{tpu_custom_call.1} parent=1 // pred_check
      _
    $region3: #{tpu_custom_call.1} parent=1 // pred_check_branch
      %13 = sbr.rel (0) target = $region5
    $region4: #{tpu_custom_call.1} parent=1 // pred_region
      %s15 = ssub.s32 16, 16
      %16 = vsyncadd [#allocation6], %s15
      %19 = dma.hbm_to_smem %s0, 16, [#allocation3], [#allocation6]
    $region5: #{tpu_custom_call.1} parent=1 // pred_fallthru
      _
    // Predicated region
    $region6: #{tpu_custom_call.1} parent=1 // pred_check
      _
    $region7: #{tpu_custom_call.1} parent=1 // pred_check_branch
      %21 = sbr.rel (0) target = $region9
    $region8: #{tpu_custom_call.1} parent=1 // pred_region
      %s22 = ssub.s32 0, 1
      %p23 = scmp.gt.s32.totalorder %s22, 0
      %s24 = scalar_select %p23, %s22, 0
      %s26 = ssub.s32 128, 128
      %27 = vsyncadd [#allocation4], %s26
      %s28 = smul.addr %s24, 128
      %s29 = scalar_lea.hbm %s1, %s28
      %s31 = sshll.u32 [#allocation7], 4
      %s32 = int_to_ptr.vmem [resolvable:$true] %s31
      %34 = dma.hbm_to_vmem [thread:$0]  %s29, 128, %s32, [#allocation4]
    $region9: #{tpu_custom_call.1} parent=1 // pred_fallthru
      _
    // Predicated region
    $region10: #{tpu_custom_call.1} parent=1 // pred_check
      _
    $region11: #{tpu_custom_call.1} parent=1 // pred_check_branch
      %36 = sbr.rel (0) target = $region13
    $region12: #{tpu_custom_call.1} parent=1 // pred_region
      %s38 = ssub.s32 128, 128
      %39 = vsyncadd [#allocation9], %s38
      %s41 = sshll.u32 [#allocation8], 4
      %s42 = int_to_ptr.vmem [resolvable:$true] %s41
      %44 = dma.hbm_to_vmem [thread:$0]  %s2, 128, %s42, [#allocation9]
    $region13: #{tpu_custom_call.1} parent=1 // pred_fallthru
      _
    // Predicated region
    $region14: #{tpu_custom_call.1} parent=1 // pred_check
      _
    $region15: #{tpu_custom_call.1} parent=1 // pred_check_branch
      %46 = sbr.rel (0) target = $region17
    $region16: #{tpu_custom_call.1} parent=1 // pred_region
      %47 = dma.done [#allocation6], 16
    $region17: #{tpu_custom_call.1} parent=1 // pred_fallthru
      _
    // Predicated region
    $region18: #{tpu_custom_call.1} parent=1 // pred_check
      _
    $region19: #{tpu_custom_call.1} parent=1 // pred_check_branch
      %49 = sbr.rel (0) target = $region21
    $region20: #{tpu_custom_call.1} parent=1 // pred_region
      %50 = dma.done [#allocation4], 128
    $region21: #{tpu_custom_call.1} parent=1 // pred_fallthru
      _
    // Predicated region
    $region22: #{tpu_custom_call.1} parent=1 // pred_check
      _
    $region23: #{tpu_custom_call.1} parent=1 // pred_check_branch
      %52 = sbr.rel (0) target = $region25
    $region24: #{tpu_custom_call.1} parent=1 // pred_region
      %53 = dma.done [#allocation9], 128
    $region25: #{tpu_custom_call.1} parent=1 // pred_fallthru
      _
    %54 = sfence
    %s55 = ssub.s32 0, 1
    %p56 = scmp.gt.s32.totalorder %s55, 0
    %s57 = scalar_select %p56, %s55, 0
    %v58 = vld [vmem:[#allocation8] sm:$0xff]
    %s59 = sld [smem:[#allocation3]]
    %v60 = vstv %s59
    %v61 = vmul.f32 %v60, %v58
    %p62 = scmp.gt.s32.totalorder 0, 0
    %s63 = scalar_select %p62, 1, 0
    %s64 = scvt.s32.f32 %s63
    %v65 = vld [vmem:[#allocation7] sm:$0xff]
    %v66 = vstv %s64
    %v67 = vmul.f32 %v65, %v66
    %68 = vst [vmem:[#allocation2] sm:$0xff] %v67
    %69 = vst [vmem:[#allocation2 + $0x8] sm:$0xff] %v58
    %s70 = sld [smem:[#allocation3 + $0x1]]
    %v71 = vld [vmem:[#allocation2] sm:$0xff]
    %v72 = vld [vmem:[#allocation2 + $0x8] sm:$0xff]
    %v73 = vstv %s70
    %v74 = vmul.f32 %v73, %v71
    %v75 = vmul.f32 %v73, %v72
    %78 = vrot.lane.b32.xlu0 %v74, 1
    %v79 = vpop.permute.xlu0 %78
    %80 = vrot.lane.b32.xlu0 %v75, 1
    %v81 = vpop.permute.xlu0 %80
    %vm82 = vcmask 7168
    %v83 = vsel %vm82, %v79, %v81
    %v85 = vadd.f32 %v61, %v83
    %s86 = sld [smem:[#allocation3 + $0x2]]
    %v87 = vstv %s86
    %v88 = vmul.f32 %v87, %v71
    %v89 = vmul.f32 %v87, %v72
    %92 = vrot.lane.b32.xlu0 %v88, 2
    %v93 = vpop.permute.xlu0 %92
    %94 = vrot.lane.b32.xlu0 %v89, 2
    %v95 = vpop.permute.xlu0 %94
    %vm96 = vcmask 15360
    %v97 = vsel %vm96, %v93, %v95
    %v99 = vadd.f32 %v85, %v97
    %s100 = sld [smem:[#allocation3 + $0x3]]
    %v101 = vstv %s100
    %v102 = vmul.f32 %v101, %v71
    %v103 = vmul.f32 %v101, %v72
    %106 = vrot.lane.b32.xlu0 %v102, 3
    %v107 = vpop.permute.xlu0 %106
    %108 = vrot.lane.b32.xlu0 %v103, 3
    %v109 = vpop.permute.xlu0 %108
    %vm110 = vcmask 23552
    %v111 = vsel %vm110, %v107, %v109
    %v113 = vadd.f32 %v99, %v111
    %s114 = sld [smem:[#allocation3 + $0x4]]
    %v115 = vstv %s114
    %v116 = vmul.f32 %v115, %v71
    %v117 = vmul.f32 %v115, %v72
    %120 = vrot.lane.b32.xlu0 %v116, 4
    %v121 = vpop.permute.xlu0 %120
    %122 = vrot.lane.b32.xlu0 %v117, 4
    %v123 = vpop.permute.xlu0 %122
    %vm124 = vcmask 31744
    %v125 = vsel %vm124, %v121, %v123
    %v127 = vadd.f32 %v113, %v125
    %s128 = sld [smem:[#allocation3 + $0x5]]
    %v129 = vstv %s128
    %v130 = vmul.f32 %v129, %v71
    %v131 = vmul.f32 %v129, %v72
    %134 = vrot.lane.b32.xlu0 %v130, 5
    %v135 = vpop.permute.xlu0 %134
    %136 = vrot.lane.b32.xlu0 %v131, 5
    %v137 = vpop.permute.xlu0 %136
    %vm138 = vcmask 39936
    %v139 = vsel %vm138, %v135, %v137
    %v141 = vadd.f32 %v127, %v139
    %s142 = sld [smem:[#allocation3 + $0x6]]
    %v143 = vstv %s142
    %v144 = vmul.f32 %v143, %v71
    %v145 = vmul.f32 %v143, %v72
    %148 = vrot.lane.b32.xlu0 %v144, 6
    %v149 = vpop.permute.xlu0 %148
    %150 = vrot.lane.b32.xlu0 %v145, 6
    %v151 = vpop.permute.xlu0 %150
    %vm152 = vcmask 48128
    %v153 = vsel %vm152, %v149, %v151
    %v155 = vadd.f32 %v141, %v153
    %s156 = sld [smem:[#allocation3 + $0x7]]
    %v157 = vstv %s156
    %v158 = vmul.f32 %v157, %v71
    %v159 = vmul.f32 %v157, %v72
    %162 = vrot.lane.b32.xlu0 %v158, 7
    %v163 = vpop.permute.xlu0 %162
    %164 = vrot.lane.b32.xlu0 %v159, 7
    %v165 = vpop.permute.xlu0 %164
    %vm166 = vcmask 56320
    %v167 = vsel %vm166, %v163, %v165
    %v169 = vadd.f32 %v155, %v167
    %170 = vst [vmem:[#allocation10] sm:$0xff] %v169
    // Predicated region
    $region26: #{tpu_custom_call.1} parent=1 // pred_check
      _
    $region27: #{tpu_custom_call.1} parent=1 // pred_check_branch
      %172 = sbr.rel (0) target = $region29
    $region28: #{tpu_custom_call.1} parent=1 // pred_region
      %s174 = ssub.s32 128, 128
      %175 = vsyncadd [#allocation5], %s174
      %s177 = sshll.u32 [#allocation10], 4
      %s178 = int_to_ptr.vmem [resolvable:$true] %s177
      %180 = dma.vmem_to_hbm [thread:$0]  %s178, 128, %s3, [#allocation5]
    $region29: #{tpu_custom_call.1} parent=1 // pred_fallthru
      _
    // Predicated region
    $region30: #{tpu_custom_call.1} parent=1 // pred_check
      _
    $region31: #{tpu_custom_call.1} parent=1 // pred_check_branch
      %182 = sbr.rel (0) target = $region33
    $region32: #{tpu_custom_call.1} parent=1 // pred_region
      %183 = dma.done [#allocation5], 128
    $region33: #{tpu_custom_call.1} parent=1 // pred_fallthru
      _
    %184 = vsyncpa [#allocation4], 1
    %185 = vsyncpa [#allocation9], 1
    %186 = vsyncpa [#allocation5], 1
    %187 = vsyncpa [#allocation6], 1

</llo_original>
